<compile_context>
chip_gen: v5e
topology: v5e:2x2
jax: 0.10.0
libtpu: 0.0.40
codegen_flags: <defaults>
</compile_context>

<pallas_src>
import jax
import jax.numpy as jnp
from jax.experimental import pallas as pl
from jax.experimental.pallas import tpu as pltpu


def decoder_mlp_kernel(x_ref,
                       w1_ref, b1_ref,
                       w2_ref, b2_ref,
                       w3_ref, b3_ref,
                       w4_ref, b4_ref,
                       o_ref):
    # Layer 1: Linear(latent_dim -> h2_pad) + ReLU
    h = jnp.dot(x_ref[...], w1_ref[...], preferred_element_type=jnp.float32)
    h = jnp.maximum(h + b1_ref[...], 0.0)
    # Layer 2: Linear(h2_pad -> h1_pad) + ReLU
    h = jnp.dot(h, w2_ref[...], preferred_element_type=jnp.float32)
    h = jnp.maximum(h + b2_ref[...], 0.0)
    # Layer 3: Linear(h1_pad -> h0) + ReLU
    h = jnp.dot(h, w3_ref[...], preferred_element_type=jnp.float32)
    h = jnp.maximum(h + b3_ref[...], 0.0)
    # Layer 4: Linear(h0 -> output_size), no activation
    out = jnp.dot(h, w4_ref[...], preferred_element_type=jnp.float32) + b4_ref[...]
    o_ref[...] = out.astype(o_ref.dtype)


def _round_up(n, m=128):
    return m * pl.cdiv(n, m)


def prepare_params(params):
    """One-time parameter preparation (hoisted out of the forward pass).

    Zero-pads hidden widths up to a multiple of 128 so intermediate
    activations are lane-dense.  Padded weight rows/cols and bias entries are
    exactly zero, so the forward result is unchanged (adding 0.0 is exact and
    ReLU(0) = 0)."""
    w1, b1 = params["w1"], params["b1"]   # (latent, h2), (1, h2)
    w2, b2 = params["w2"], params["b2"]   # (h2, h1),     (1, h1)
    w3, b3 = params["w3"], params["b3"]   # (h1, h0),     (1, h0)
    w4, b4 = params["w4"], params["b4"]   # (h0, out),    (1, out)

    h2p = _round_up(w1.shape[1])
    h1p = _round_up(w2.shape[1])
    h0p = _round_up(w3.shape[1])

    def pad2(a, rows, cols):
        return jnp.pad(a, ((0, rows - a.shape[0]), (0, cols - a.shape[1])))

    return dict(
        w1=pad2(w1, w1.shape[0], h2p), b1=pad2(b1, 1, h2p),
        w2=pad2(w2, h2p, h1p),         b2=pad2(b2, 1, h1p),
        w3=pad2(w3, h1p, h0p),         b3=pad2(b3, 1, h0p),
        w4=pad2(w4, h0p, w4.shape[1]), b4=b4,
    )


def decoder_forward(x, p):
    """x: (B, latent_dim) f32; p: prepared (padded) params from prepare_params.

    Single-shot fused MLP: no grid, no pipelining.  Every operand lives whole
    in VMEM for the duration of the kernel; the output is written at its true
    width (784), so there is no per-call pad or post-call slice."""
    B = x.shape[0]
    out_dim = p["w4"].shape[1]

    vmem = pl.BlockSpec(memory_space=pltpu.MemorySpace.VMEM)

    flops = 2 * B * sum(p[k].shape[0] * p[k].shape[1]
                        for k in ("w1", "w2", "w3", "w4"))
    bytes_accessed = 4 * (x.size + sum(int(v.size) for v in p.values())
                          + B * out_dim)
    cost = pl.CostEstimate(flops=flops, transcendentals=0,
                           bytes_accessed=bytes_accessed)

    return pl.pallas_call(
        decoder_mlp_kernel,
        out_shape=jax.ShapeDtypeStruct((B, out_dim), jnp.float32),
        in_specs=[vmem] * 9,
        out_specs=vmem,
        cost_estimate=cost,
    )(x, p["w1"], p["b1"], p["w2"], p["b2"], p["w3"], p["b3"], p["w4"], p["b4"])


def init_linear(key, in_dim, out_dim):
    """Deterministic init mimicking nn.Linear default: U(-1/sqrt(in), 1/sqrt(in)).
    Returned weight is already transposed to (in_dim, out_dim)."""
    kw, kb = jax.random.split(key)
    bound = 1.0 / jnp.sqrt(jnp.float32(in_dim))
    w = jax.random.uniform(kw, (in_dim, out_dim), jnp.float32, -bound, bound)
    b = jax.random.uniform(kb, (1, out_dim), jnp.float32, -bound, bound)
    return w, b


def reference_forward(x, params):
    h = jnp.maximum(x @ params["w1"] + params["b1"], 0.0)
    h = jnp.maximum(h @ params["w2"] + params["b2"], 0.0)
    h = jnp.maximum(h @ params["w3"] + params["b3"], 0.0)
    return h @ params["w4"] + params["b4"]


if __name__ == "__main__":
    # hparams (match the PyTorch module's hparams dict)
    latent_dim = 20
    n_hidden_2 = 32
    n_hidden_1 = 64
    n_hidden_0 = 128
    output_size = 28 * 28
    batch = 64

    key = jax.random.PRNGKey(0)
    kx, k1, k2, k3, k4 = jax.random.split(key, 5)

    x = jax.random.normal(kx, (batch, latent_dim), jnp.float32)

    w1, b1 = init_linear(k1, latent_dim, n_hidden_2)
    w2, b2 = init_linear(k2, n_hidden_2, n_hidden_1)
    w3, b3 = init_linear(k3, n_hidden_1, n_hidden_0)
    w4, b4 = init_linear(k4, n_hidden_0, output_size)
    params = dict(w1=w1, b1=b1, w2=w2, b2=b2, w3=w3, b3=b3, w4=w4, b4=b4)

    # One-time parameter preparation (outside the per-call forward path).
    prepared = jax.tree_util.tree_map(jax.block_until_ready,
                                      prepare_params(params))

    out = decoder_forward(x, prepared)
    out = jax.block_until_ready(out)

    ref = reference_forward(x, params)
    assert out.shape == (batch, output_size)
    assert jnp.allclose(out, ref, atol=1e-4, rtol=1e-4), "mismatch vs JAX reference"

    print("KERNEL_OK")
</pallas_src>

<mosaic_0001>
module attributes {stable_mosaic.version = 11 : i64} {
  func.func @decoder_mlp_kernel(%arg0: memref<64x20xf32, #tpu.memory_space<vmem>>, %arg1: memref<20x128xf32, #tpu.memory_space<vmem>>, %arg2: memref<1x128xf32, #tpu.memory_space<vmem>>, %arg3: memref<128x128xf32, #tpu.memory_space<vmem>>, %arg4: memref<1x128xf32, #tpu.memory_space<vmem>>, %arg5: memref<128x128xf32, #tpu.memory_space<vmem>>, %arg6: memref<1x128xf32, #tpu.memory_space<vmem>>, %arg7: memref<128x784xf32, #tpu.memory_space<vmem>>, %arg8: memref<1x784xf32, #tpu.memory_space<vmem>>, %arg9: memref<64x784xf32, #tpu.memory_space<vmem>>) attributes {dimension_semantics = [], scalar_prefetch = 0 : i64, scratch_operands = 0 : i64, tpu.core_type = #tpu.core_type<tc>} {
    %c0 = arith.constant 0 : index
    %c0_0 = arith.constant 0 : index
    %0 = vector.load %arg0[%c0, %c0_0] : memref<64x20xf32, #tpu.memory_space<vmem>>, vector<64x20xf32>
    %c0_1 = arith.constant 0 : index
    %c0_2 = arith.constant 0 : index
    %1 = vector.load %arg1[%c0_1, %c0_2] : memref<20x128xf32, #tpu.memory_space<vmem>>, vector<20x128xf32>
    %cst = arith.constant dense<0.000000e+00> : vector<64x128xf32>
    %2 = tpu.matmul %0, %1, %cst {dimension_numbers = #tpu.dot_dimension_numbers<[1], [0], [0], [1], [0, 0, 1, 1], [], []>} : vector<64x20xf32>, vector<20x128xf32>, vector<64x128xf32> -> vector<64x128xf32>
    %c0_3 = arith.constant 0 : index
    %c0_4 = arith.constant 0 : index
    %3 = vector.load %arg2[%c0_3, %c0_4] : memref<1x128xf32, #tpu.memory_space<vmem>>, vector<1x128xf32>
    %4 = vector.broadcast %3 : vector<1x128xf32> to vector<64x128xf32>
    %5 = arith.addf %2, %4 : vector<64x128xf32>
    %cst_5 = arith.constant 0.000000e+00 : f32
    %6 = vector.broadcast %cst_5 : f32 to vector<64x128xf32>
    %7 = arith.maximumf %5, %6 : vector<64x128xf32>
    %c0_6 = arith.constant 0 : index
    %c0_7 = arith.constant 0 : index
    %8 = vector.load %arg3[%c0_6, %c0_7] : memref<128x128xf32, #tpu.memory_space<vmem>>, vector<128x128xf32>
    %cst_8 = arith.constant dense<0.000000e+00> : vector<64x128xf32>
    %9 = tpu.matmul %7, %8, %cst_8 {dimension_numbers = #tpu.dot_dimension_numbers<[1], [0], [0], [1], [0, 0, 1, 1], [], []>} : vector<64x128xf32>, vector<128x128xf32>, vector<64x128xf32> -> vector<64x128xf32>
    %c0_9 = arith.constant 0 : index
    %c0_10 = arith.constant 0 : index
    %10 = vector.load %arg4[%c0_9, %c0_10] : memref<1x128xf32, #tpu.memory_space<vmem>>, vector<1x128xf32>
    %11 = vector.broadcast %10 : vector<1x128xf32> to vector<64x128xf32>
    %12 = arith.addf %9, %11 : vector<64x128xf32>
    %cst_11 = arith.constant 0.000000e+00 : f32
    %13 = vector.broadcast %cst_11 : f32 to vector<64x128xf32>
    %14 = arith.maximumf %12, %13 : vector<64x128xf32>
    %c0_12 = arith.constant 0 : index
    %c0_13 = arith.constant 0 : index
    %15 = vector.load %arg5[%c0_12, %c0_13] : memref<128x128xf32, #tpu.memory_space<vmem>>, vector<128x128xf32>
    %cst_14 = arith.constant dense<0.000000e+00> : vector<64x128xf32>
    %16 = tpu.matmul %14, %15, %cst_14 {dimension_numbers = #tpu.dot_dimension_numbers<[1], [0], [0], [1], [0, 0, 1, 1], [], []>} : vector<64x128xf32>, vector<128x128xf32>, vector<64x128xf32> -> vector<64x128xf32>
    %c0_15 = arith.constant 0 : index
    %c0_16 = arith.constant 0 : index
    %17 = vector.load %arg6[%c0_15, %c0_16] : memref<1x128xf32, #tpu.memory_space<vmem>>, vector<1x128xf32>
    %18 = vector.broadcast %17 : vector<1x128xf32> to vector<64x128xf32>
    %19 = arith.addf %16, %18 : vector<64x128xf32>
    %cst_17 = arith.constant 0.000000e+00 : f32
    %20 = vector.broadcast %cst_17 : f32 to vector<64x128xf32>
    %21 = arith.maximumf %19, %20 : vector<64x128xf32>
    %c0_18 = arith.constant 0 : index
    %c0_19 = arith.constant 0 : index
    %22 = vector.load %arg7[%c0_18, %c0_19] : memref<128x784xf32, #tpu.memory_space<vmem>>, vector<128x784xf32>
    %cst_20 = arith.constant dense<0.000000e+00> : vector<64x784xf32>
    %23 = tpu.matmul %21, %22, %cst_20 {dimension_numbers = #tpu.dot_dimension_numbers<[1], [0], [0], [1], [0, 0, 1, 1], [], []>} : vector<64x128xf32>, vector<128x784xf32>, vector<64x784xf32> -> vector<64x784xf32>
    %c0_21 = arith.constant 0 : index
    %c0_22 = arith.constant 0 : index
    %24 = vector.load %arg8[%c0_21, %c0_22] : memref<1x784xf32, #tpu.memory_space<vmem>>, vector<1x784xf32>
    %25 = vector.broadcast %24 : vector<1x784xf32> to vector<64x784xf32>
    %26 = arith.addf %23, %25 : vector<64x784xf32>
    %c0_23 = arith.constant 0 : index
    %c0_24 = arith.constant 0 : index
    %27 = vector.load %arg9[%c0_23, %c0_24] : memref<64x784xf32, #tpu.memory_space<vmem>>, vector<64x784xf32>
    tpu.vector_store %arg9[%c0_23, %c0_24], %26 {strides = array<i32>} : memref<64x784xf32, #tpu.memory_space<vmem>>, vector<64x784xf32>,
    return
  }
}

</mosaic_0001>

<llo_original>
// kernel: tpu_custom_call.1
$region0: #{tpu_custom_call.1}
  #allocation0 [shape = 'u32[]', space=smem, size = 0x4, offset = 0x4, fixed_abs, tag = 'smem constant byte address 0x4 - core index']
  #allocation1 [shape = 'u32[72,128]{1,0:T(1,128)}', space=vmem, size = 0x9000, scoped, tag = 'internal scratch']
  %s0 = inlined_call_operand.vmem [shape: f32[64,20], index: 0, kind: input, shape index: {}]
  %s1 = inlined_call_operand.vmem [shape: f32[20,128], index: 1, kind: input, shape index: {}]
  %s2 = inlined_call_operand.vmem [shape: f32[1,128], index: 2, kind: input, shape index: {}]
  %s3 = inlined_call_operand.vmem [shape: f32[128,128], index: 3, kind: input, shape index: {}]
  %s4 = inlined_call_operand.vmem [shape: f32[1,128], index: 4, kind: input, shape index: {}]
  %s5 = inlined_call_operand.vmem [shape: f32[128,128], index: 5, kind: input, shape index: {}]
  %s6 = inlined_call_operand.vmem [shape: f32[1,128], index: 6, kind: input, shape index: {}]
  %s7 = inlined_call_operand.vmem [shape: f32[128,784], index: 7, kind: input, shape index: {}]
  %s8 = inlined_call_operand.vmem [shape: f32[1,784], index: 8, kind: input, shape index: {}]
  %s9 = inlined_call_operand.hbm [shape: f32[64,784], index: 9, kind: output, shape index: {}]
  %s10 = sld [smem:[#allocation0]]
  $region46: #{tpu_custom_call.1} parent=0
    _
  %s12 = ssub.s32 1, %s10
  %s13 = scalar_select 0, %s12, %s10
  $region1: #{tpu_custom_call.1} parent=0
    #allocation2 [shape = 'u8[229376]{0}', space=vmem, size = 0x38000, scoped, tag = 'output window, operand 0, single buffered']
    #allocation3 [shape = 's32[1]{0}', space=sflag, size = 0x4, scoped, tag = 'scoped memory for tpu_custom_call.1']
    %14 = vsyncpa [#allocation3], 0
    // Predicated region
    $region2: #{tpu_custom_call.1} parent=1 // pred_check
      _
    $region3: #{tpu_custom_call.1} parent=1 // pred_check_branch
      %16 = sbr.rel (0) target = $region5
    $region4: #{tpu_custom_call.1} parent=1 // pred_region
      _
    $region5: #{tpu_custom_call.1} parent=1 // pred_fallthru
      _
    // Predicated region
    $region6: #{tpu_custom_call.1} parent=1 // pred_check
      _
    $region7: #{tpu_custom_call.1} parent=1 // pred_check_branch
      %18 = sbr.rel (0) target = $region9
    $region8: #{tpu_custom_call.1} parent=1 // pred_region
      _
    $region9: #{tpu_custom_call.1} parent=1 // pred_fallthru
      _
    // Predicated region
    $region10: #{tpu_custom_call.1} parent=1 // pred_check
      _
    $region11: #{tpu_custom_call.1} parent=1 // pred_check_branch
      %20 = sbr.rel (0) target = $region13
    $region12: #{tpu_custom_call.1} parent=1 // pred_region
      _
    $region13: #{tpu_custom_call.1} parent=1 // pred_fallthru
      _
    // Predicated region
    $region14: #{tpu_custom_call.1} parent=1 // pred_check
      _
    $region15: #{tpu_custom_call.1} parent=1 // pred_check_branch
      %22 = sbr.rel (0) target = $region17
    $region16: #{tpu_custom_call.1} parent=1 // pred_region
      _
    $region17: #{tpu_custom_call.1} parent=1 // pred_fallthru
      _
    // Predicated region
    $region18: #{tpu_custom_call.1} parent=1 // pred_check
      _
    $region19: #{tpu_custom_call.1} parent=1 // pred_check_branch
      %24 = sbr.rel (0) target = $region21
    $region20: #{tpu_custom_call.1} parent=1 // pred_region
      _
    $region21: #{tpu_custom_call.1} parent=1 // pred_fallthru
      _
    // Predicated region
    $region22: #{tpu_custom_call.1} parent=1 // pred_check
      _
    $region23: #{tpu_custom_call.1} parent=1 // pred_check_branch
      %26 = sbr.rel (0) target = $region25
    $region24: #{tpu_custom_call.1} parent=1 // pred_region
      _
    $region25: #{tpu_custom_call.1} parent=1 // pred_fallthru
      _
    // Predicated region
    $region26: #{tpu_custom_call.1} parent=1 // pred_check
      _
    $region27: #{tpu_custom_call.1} parent=1 // pred_check_branch
      %28 = sbr.rel (0) target = $region29
    $region28: #{tpu_custom_call.1} parent=1 // pred_region
      _
    $region29: #{tpu_custom_call.1} parent=1 // pred_fallthru
      _
    // Predicated region
    $region30: #{tpu_custom_call.1} parent=1 // pred_check
      _
    $region31: #{tpu_custom_call.1} parent=1 // pred_check_branch
      %30 = sbr.rel (0) target = $region33
    $region32: #{tpu_custom_call.1} parent=1 // pred_region
      _
    $region33: #{tpu_custom_call.1} parent=1 // pred_fallthru
      _
    // Predicated region
    $region34: #{tpu_custom_call.1} parent=1 // pred_check
      _
    $region35: #{tpu_custom_call.1} parent=1 // pred_check_branch
      %32 = sbr.rel (0) target = $region37
    $region36: #{tpu_custom_call.1} parent=1 // pred_region
      _
    $region37: #{tpu_custom_call.1} parent=1 // pred_fallthru
      _
    %v33 = vld [vmem:[%s0] sm:$0xff]
    %v34 = vld [vmem:[%s0 + $0x8] sm:$0xff]
    %v35 = vld [vmem:[%s0 + $0x10] sm:$0xff]
    %v36 = vld [vmem:[%s0 + $0x18] sm:$0xff]
    %v37 = vld [vmem:[%s0 + $0x20] sm:$0xff]
    %v38 = vld [vmem:[%s0 + $0x28] sm:$0xff]
    %v39 = vld [vmem:[%s0 + $0x30] sm:$0xff]
    %v40 = vld [vmem:[%s0 + $0x38] sm:$0xff]
    %v41 = vld [vmem:[%s1] sm:$0xff]
    %v42 = vld [vmem:[%s1 + $0x8] sm:$0xff]
    %v43 = vld [vmem:[%s1 + $0x10] sm:$0xf]
    %v44 = vld [vmem:[%s2] sm:$0x1]
    %v46 = vperm.slane %v44, 0
    %vm48 = vcmask 162816
    %v50 = vsel %vm48, %v33, 0
    %v53 = vsel %vm48, %v34, 0
    %v56 = vsel %vm48, %v35, 0
    %v59 = vsel %vm48, %v36, 0
    %v62 = vsel %vm48, %v37, 0
    %v65 = vsel %vm48, %v38, 0
    %v68 = vsel %vm48, %v39, 0
    %v71 = vsel %vm48, %v40, 0
    %vm73 = vcmask 1043456
    %v75 = vsel %vm73, %v43, 0
    %77 = vmatpush.msra.mxu0 0.0
    %78 = vmatpush.msra.mxu0 0.0
    %79 = vmatpush.msra.mxu0 0.0
    %80 = vmatpush.msra.mxu0 0.0
    %81 = vmatpush.msra.mxu0 0.0
    %82 = vmatpush.msra.mxu0 0.0
    %83 = vmatpush.msra.mxu0 0.0
    %84 = vmatpush.msra.mxu0 0.0
    %85 = vmatpush.msra.mxu0 0.0
    %86 = vmatpush.msra.mxu0 0.0
    %87 = vmatpush.msra.mxu0 0.0
    %88 = vmatpush.msra.mxu0 0.0
    %89 = vmatpush.msra.mxu0 0.0
    %90 = vmatpush.msra.mxu0 %v75
    %91 = vmatpush.msra.mxu0 %v42
    %92 = vmatpush.msra.mxu0 %v41
    %93 = vmatmul.f32.gmra.mxu0 %v50
    %v94 = vpop.f32.mrf.mxu0
    %v95 = vadd.f32 %v46, %v94
    %96 = vmatmul.f32.gmra.mxu0 %v53
    %v97 = vpop.f32.mrf.mxu0
    %v98 = vadd.f32 %v46, %v97
    %99 = vmatmul.f32.gmra.mxu0 %v56
    %v100 = vpop.f32.mrf.mxu0
    %v101 = vadd.f32 %v46, %v100
    %102 = vmatmul.f32.gmra.mxu0 %v59
    %v103 = vpop.f32.mrf.mxu0
    %v104 = vadd.f32 %v46, %v103
    %105 = vmatmul.f32.gmra.mxu0 %v62
    %v106 = vpop.f32.mrf.mxu0
    %v107 = vadd.f32 %v46, %v106
    %108 = vmatmul.f32.gmra.mxu0 %v65
    %v109 = vpop.f32.mrf.mxu0
    %v110 = vadd.f32 %v46, %v109
    %111 = vmatmul.f32.gmra.mxu0 %v68
    %v112 = vpop.f32.mrf.mxu0
    %v113 = vadd.f32 %v46, %v112
    %114 = vmatmul.f32.gmra.mxu0 %v71
    %v115 = vpop.f32.mrf.mxu0
    %v116 = vadd.f32 %v46, %v115
    %117 = vdwg.mxu0
    %v118 = vmax.f32 %v95, 0.0
    %v119 = vmax.f32 %v98, 0.0
    %v120 = vmax.f32 %v101, 0.0
    %v121 = vmax.f32 %v104, 0.0
    %v122 = vmax.f32 %v107, 0.0
    %v123 = vmax.f32 %v110, 0.0
    %v124 = vmax.f32 %v113, 0.0
    %v125 = vmax.f32 %v116, 0.0
    %v126 = vld [vmem:[%s3] sm:$0xff]
    %v127 = vld [vmem:[%s3 + $0x8] sm:$0xff]
    %v128 = vld [vmem:[%s3 + $0x10] sm:$0xff]
    %v129 = vld [vmem:[%s3 + $0x18] sm:$0xff]
    %v130 = vld [vmem:[%s3 + $0x20] sm:$0xff]
    %v131 = vld [vmem:[%s3 + $0x28] sm:$0xff]
    %v132 = vld [vmem:[%s3 + $0x30] sm:$0xff]
    %v133 = vld [vmem:[%s3 + $0x38] sm:$0xff]
    %v134 = vld [vmem:[%s3 + $0x40] sm:$0xff]
    %v135 = vld [vmem:[%s3 + $0x48] sm:$0xff]
    %v136 = vld [vmem:[%s3 + $0x50] sm:$0xff]
    %v137 = vld [vmem:[%s3 + $0x58] sm:$0xff]
    %v138 = vld [vmem:[%s3 + $0x60] sm:$0xff]
    %v139 = vld [vmem:[%s3 + $0x68] sm:$0xff]
    %v140 = vld [vmem:[%s3 + $0x70] sm:$0xff]
    %v141 = vld [vmem:[%s3 + $0x78] sm:$0xff]
    %v142 = vld [vmem:[%s4] sm:$0x1]
    %v144 = vperm.slane %v142, 0
    %146 = vmatpush.msra.mxu0 %v141
    %147 = vmatpush.msra.mxu0 %v140
    %148 = vmatpush.msra.mxu0 %v139
    %149 = vmatpush.msra.mxu0 %v138
    %150 = vmatpush.msra.mxu0 %v137
    %151 = vmatpush.msra.mxu0 %v136
    %152 = vmatpush.msra.mxu0 %v135
    %153 = vmatpush.msra.mxu0 %v134
    %154 = vmatpush.msra.mxu0 %v133
    %155 = vmatpush.msra.mxu0 %v132
    %156 = vmatpush.msra.mxu0 %v131
    %157 = vmatpush.msra.mxu0 %v130
    %158 = vmatpush.msra.mxu0 %v129
    %159 = vmatpush.msra.mxu0 %v128
    %160 = vmatpush.msra.mxu0 %v127
    %161 = vmatpush.msra.mxu0 %v126
    %162 = vmatmul.f32.gmra.mxu0 %v118
    %v163 = vpop.f32.mrf.mxu0
    %v164 = vadd.f32 %v144, %v163
    %165 = vmatmul.f32.gmra.mxu0 %v119
    %v166 = vpop.f32.mrf.mxu0
    %v167 = vadd.f32 %v144, %v166
    %168 = vmatmul.f32.gmra.mxu0 %v120
    %v169 = vpop.f32.mrf.mxu0
    %v170 = vadd.f32 %v144, %v169
    %171 = vmatmul.f32.gmra.mxu0 %v121
    %v172 = vpop.f32.mrf.mxu0
    %v173 = vadd.f32 %v144, %v172
    %174 = vmatmul.f32.gmra.mxu0 %v122
    %v175 = vpop.f32.mrf.mxu0
    %v176 = vadd.f32 %v144, %v175
    %177 = vmatmul.f32.gmra.mxu0 %v123
    %v178 = vpop.f32.mrf.mxu0
    %v179 = vadd.f32 %v144, %v178
    %180 = vmatmul.f32.gmra.mxu0 %v124
    %v181 = vpop.f32.mrf.mxu0
    %v182 = vadd.f32 %v144, %v181
    %183 = vmatmul.f32.gmra.mxu0 %v125
    %v184 = vpop.f32.mrf.mxu0
    %v185 = vadd.f32 %v144, %v184
    %186 = vdwg.mxu0
    %v187 = vmax.f32 %v164, 0.0
    %v188 = vmax.f32 %v167, 0.0
    %v189 = vmax.f32 %v170, 0.0
    %v190 = vmax.f32 %v173, 0.0
    %v191 = vmax.f32 %v176, 0.0
    %v192 = vmax.f32 %v179, 0.0
    %v193 = vmax.f32 %v182, 0.0
    %v194 = vmax.f32 %v185, 0.0
    %v195 = vld [vmem:[%s5] sm:$0xff]
    %v196 = vld [vmem:[%s5 + $0x8] sm:$0xff]
    %v197 = vld [vmem:[%s5 + $0x10] sm:$0xff]
    %v198 = vld [vmem:[%s5 + $0x18] sm:$0xff]
    %v199 = vld [vmem:[%s5 + $0x20] sm:$0xff]
    %v200 = vld [vmem:[%s5 + $0x28] sm:$0xff]
    %v201 = vld [vmem:[%s5 + $0x30] sm:$0xff]
    %v202 = vld [vmem:[%s5 + $0x38] sm:$0xff]
    %v203 = vld [vmem:[%s5 + $0x40] sm:$0xff]
    %v204 = vld [vmem:[%s5 + $0x48] sm:$0xff]
    %v205 = vld [vmem:[%s5 + $0x50] sm:$0xff]
    %v206 = vld [vmem:[%s5 + $0x58] sm:$0xff]
    %v207 = vld [vmem:[%s5 + $0x60] sm:$0xff]
    %v208 = vld [vmem:[%s5 + $0x68] sm:$0xff]
    %v209 = vld [vmem:[%s5 + $0x70] sm:$0xff]
    %v210 = vld [vmem:[%s5 + $0x78] sm:$0xff]
    %v211 = vld [vmem:[%s6] sm:$0x1]
    %v213 = vperm.slane %v211, 0
    %215 = vmatpush.msra.mxu0 %v210
    %216 = vmatpush.msra.mxu0 %v209
    %217 = vmatpush.msra.mxu0 %v208
    %218 = vmatpush.msra.mxu0 %v207
    %219 = vmatpush.msra.mxu0 %v206
    %220 = vmatpush.msra.mxu0 %v205
    %221 = vmatpush.msra.mxu0 %v204
    %222 = vmatpush.msra.mxu0 %v203
    %223 = vmatpush.msra.mxu0 %v202
    %224 = vmatpush.msra.mxu0 %v201
    %225 = vmatpush.msra.mxu0 %v200
    %226 = vmatpush.msra.mxu0 %v199
    %227 = vmatpush.msra.mxu0 %v198
    %228 = vmatpush.msra.mxu0 %v197
    %229 = vmatpush.msra.mxu0 %v196
    %230 = vmatpush.msra.mxu0 %v195
    %231 = vmatmul.f32.gmra.mxu0 %v187
    %v232 = vpop.f32.mrf.mxu0
    %v233 = vadd.f32 %v213, %v232
    %234 = vmatmul.f32.gmra.mxu0 %v188
    %v235 = vpop.f32.mrf.mxu0
    %v236 = vadd.f32 %v213, %v235
    %237 = vmatmul.f32.gmra.mxu0 %v189
    %v238 = vpop.f32.mrf.mxu0
    %v239 = vadd.f32 %v213, %v238
    %240 = vmatmul.f32.gmra.mxu0 %v190
    %v241 = vpop.f32.mrf.mxu0
    %v242 = vadd.f32 %v213, %v241
    %243 = vmatmul.f32.gmra.mxu0 %v191
    %v244 = vpop.f32.mrf.mxu0
    %v245 = vadd.f32 %v213, %v244
    %246 = vmatmul.f32.gmra.mxu0 %v192
    %v247 = vpop.f32.mrf.mxu0
    %v248 = vadd.f32 %v213, %v247
    %249 = vmatmul.f32.gmra.mxu0 %v193
    %v250 = vpop.f32.mrf.mxu0
    %v251 = vadd.f32 %v213, %v250
    %252 = vmatmul.f32.gmra.mxu0 %v194
    %v253 = vpop.f32.mrf.mxu0
    %v254 = vadd.f32 %v213, %v253
    %255 = vdwg.mxu0
    %v256 = vmax.f32 %v233, 0.0
    %v257 = vmax.f32 %v236, 0.0
    %v258 = vmax.f32 %v239, 0.0
    %v259 = vmax.f32 %v242, 0.0
    %v260 = vmax.f32 %v245, 0.0
    %v261 = vmax.f32 %v248, 0.0
    %v262 = vmax.f32 %v251, 0.0
    %v263 = vmax.f32 %v254, 0.0
    %v264 = vld [vmem:[%s7] sm:$0xff]
    %v265 = vld [vmem:[%s7 + $0x8] sm:$0xff]
    %v266 = vld [vmem:[%s7 + $0x10] sm:$0xff]
    %v267 = vld [vmem:[%s7 + $0x18] sm:$0xff]
    %v268 = vld [vmem:[%s7 + $0x20] sm:$0xff]
    %v269 = vld [vmem:[%s7 + $0x28] sm:$0xff]
    %v270 = vld [vmem:[%s7 + $0x30] sm:$0xff]
    %v271 = vld [vmem:[%s7 + $0x38] sm:$0xff]
    %v272 = vld [vmem:[%s7 + $0x40] sm:$0xff]
    %v273 = vld [vmem:[%s7 + $0x48] sm:$0xff]
    %v274 = vld [vmem:[%s7 + $0x50] sm:$0xff]
    %v275 = vld [vmem:[%s7 + $0x58] sm:$0xff]
    %v276 = vld [vmem:[%s7 + $0x60] sm:$0xff]
    %v277 = vld [vmem:[%s7 + $0x68] sm:$0xff]
    %v278 = vld [vmem:[%s7 + $0x70] sm:$0xff]
    %v279 = vld [vmem:[%s7 + $0x78] sm:$0xff]
    %v280 = vld [vmem:[%s7 + $0x80] sm:$0xff]
    %v281 = vld [vmem:[%s7 + $0x88] sm:$0xff]
    %v282 = vld [vmem:[%s7 + $0x90] sm:$0xff]
    %v283 = vld [vmem:[%s7 + $0x98] sm:$0xff]
    %v284 = vld [vmem:[%s7 + $0xa0] sm:$0xff]
    %v285 = vld [vmem:[%s7 + $0xa8] sm:$0xff]
    %v286 = vld [vmem:[%s7 + $0xb0] sm:$0xff]
    %v287 = vld [vmem:[%s7 + $0xb8] sm:$0xff]
    %v288 = vld [vmem:[%s7 + $0xc0] sm:$0xff]
    %v289 = vld [vmem:[%s7 + $0xc8] sm:$0xff]
    %v290 = vld [vmem:[%s7 + $0xd0] sm:$0xff]
    %v291 = vld [vmem:[%s7 + $0xd8] sm:$0xff]
    %v292 = vld [vmem:[%s7 + $0xe0] sm:$0xff]
    %v293 = vld [vmem:[%s7 + $0xe8] sm:$0xff]
    %v294 = vld [vmem:[%s7 + $0xf0] sm:$0xff]
    %v295 = vld [vmem:[%s7 + $0xf8] sm:$0xff]
    %v296 = vld [vmem:[%s7 + $0x100] sm:$0xff]
    %v297 = vld [vmem:[%s7 + $0x108] sm:$0xff]
    %v298 = vld [vmem:[%s7 + $0x110] sm:$0xff]
    %v299 = vld [vmem:[%s7 + $0x118] sm:$0xff]
    %v300 = vld [vmem:[%s7 + $0x120] sm:$0xff]
    %v301 = vld [vmem:[%s7 + $0x128] sm:$0xff]
    %v302 = vld [vmem:[%s7 + $0x130] sm:$0xff]
    %v303 = vld [vmem:[%s7 + $0x138] sm:$0xff]
    %v304 = vld [vmem:[%s7 + $0x140] sm:$0xff]
    %v305 = vld [vmem:[%s7 + $0x148] sm:$0xff]
    %v306 = vld [vmem:[%s7 + $0x150] sm:$0xff]
    %v307 = vld [vmem:[%s7 + $0x158] sm:$0xff]
    %v308 = vld [vmem:[%s7 + $0x160] sm:$0xff]
    %v309 = vld [vmem:[%s7 + $0x168] sm:$0xff]
    %v310 = vld [vmem:[%s7 + $0x170] sm:$0xff]
    %v311 = vld [vmem:[%s7 + $0x178] sm:$0xff]
    %v312 = vld [vmem:[%s7 + $0x180] sm:$0xff]
    %v313 = vld [vmem:[%s7 + $0x188] sm:$0xff]
    %v314 = vld [vmem:[%s7 + $0x190] sm:$0xff]
    %v315 = vld [vmem:[%s7 + $0x198] sm:$0xff]
    %v316 = vld [vmem:[%s7 + $0x1a0] sm:$0xff]
    %v317 = vld [vmem:[%s7 + $0x1a8] sm:$0xff]
    %v318 = vld [vmem:[%s7 + $0x1b0] sm:$0xff]
    %v319 = vld [vmem:[%s7 + $0x1b8] sm:$0xff]
    %v320 = vld [vmem:[%s7 + $0x1c0] sm:$0xff]
    %v321 = vld [vmem:[%s7 + $0x1c8] sm:$0xff]
    %v322 = vld [vmem:[%s7 + $0x1d0] sm:$0xff]
    %v323 = vld [vmem:[%s7 + $0x1d8] sm:$0xff]
    %v324 = vld [vmem:[%s7 + $0x1e0] sm:$0xff]
    %v325 = vld [vmem:[%s7 + $0x1e8] sm:$0xff]
    %v326 = vld [vmem:[%s7 + $0x1f0] sm:$0xff]
    %v327 = vld [vmem:[%s7 + $0x1f8] sm:$0xff]
    %v328 = vld [vmem:[%s7 + $0x200] sm:$0xff]
    %v329 = vld [vmem:[%s7 + $0x208] sm:$0xff]
    %v330 = vld [vmem:[%s7 + $0x210] sm:$0xff]
    %v331 = vld [vmem:[%s7 + $0x218] sm:$0xff]
    %v332 = vld [vmem:[%s7 + $0x220] sm:$0xff]
    %v333 = vld [vmem:[%s7 + $0x228] sm:$0xff]
    %v334 = vld [vmem:[%s7 + $0x230] sm:$0xff]
    %v335 = vld [vmem:[%s7 + $0x238] sm:$0xff]
    %v336 = vld [vmem:[%s7 + $0x240] sm:$0xff]
    %v337 = vld [vmem:[%s7 + $0x248] sm:$0xff]
    %v338 = vld [vmem:[%s7 + $0x250] sm:$0xff]
    %v339 = vld [vmem:[%s7 + $0x258] sm:$0xff]
    %v340 = vld [vmem:[%s7 + $0x260] sm:$0xff]
    %v341 = vld [vmem:[%s7 + $0x268] sm:$0xff]
    %v342 = vld [vmem:[%s7 + $0x270] sm:$0xff]
    %v343 = vld [vmem:[%s7 + $0x278] sm:$0xff]
    %v344 = vld [vmem:[%s7 + $0x280] sm:$0xff]
    %v345 = vld [vmem:[%s7 + $0x288] sm:$0xff]
    %v346 = vld [vmem:[%s7 + $0x290] sm:$0xff]
    %v347 = vld [vmem:[%s7 + $0x298] sm:$0xff]
    %v348 = vld [vmem:[%s7 + $0x2a0] sm:$0xff]
    %v349 = vld [vmem:[%s7 + $0x2a8] sm:$0xff]
    %v350 = vld [vmem:[%s7 + $0x2b0] sm:$0xff]
    %v351 = vld [vmem:[%s7 + $0x2b8] sm:$0xff]
    %v352 = vld [vmem:[%s7 + $0x2c0] sm:$0xff]
    %v353 = vld [vmem:[%s7 + $0x2c8] sm:$0xff]
    %v354 = vld [vmem:[%s7 + $0x2d0] sm:$0xff]
    %v355 = vld [vmem:[%s7 + $0x2d8] sm:$0xff]
    %v356 = vld [vmem:[%s7 + $0x2e0] sm:$0xff]
    %v357 = vld [vmem:[%s7 + $0x2e8] sm:$0xff]
    %v358 = vld [vmem:[%s7 + $0x2f0] sm:$0xff]
    %v359 = vld [vmem:[%s7 + $0x2f8] sm:$0xff]
    %v360 = vld [vmem:[%s7 + $0x300] sm:$0xff]
    %v361 = vld [vmem:[%s7 + $0x308] sm:$0xff]
    %v362 = vld [vmem:[%s7 + $0x310] sm:$0xff]
    %v363 = vld [vmem:[%s7 + $0x318] sm:$0xff]
    %v364 = vld [vmem:[%s7 + $0x320] sm:$0xff]
    %v365 = vld [vmem:[%s7 + $0x328] sm:$0xff]
    %v366 = vld [vmem:[%s7 + $0x330] sm:$0xff]
    %v367 = vld [vmem:[%s7 + $0x338] sm:$0xff]
    %v368 = vld [vmem:[%s7 + $0x340] sm:$0xff]
    %v369 = vld [vmem:[%s7 + $0x348] sm:$0xff]
    %v370 = vld [vmem:[%s7 + $0x350] sm:$0xff]
    %v371 = vld [vmem:[%s7 + $0x358] sm:$0xff]
    %v372 = vld [vmem:[%s7 + $0x360] sm:$0xff]
    %v373 = vld [vmem:[%s7 + $0x368] sm:$0xff]
    %v374 = vld [vmem:[%s7 + $0x370] sm:$0xff]
    %v375 = vld [vmem:[%s7 + $0x378] sm:$0xff]
    %v376 = vld [vmem:[%s8] sm:$0x7f]
    %v378 = vperm.slane %v376, 0
    %v379 = vperm.slane %v376, 1
    %v380 = vperm.slane %v376, 2
    %v381 = vperm.slane %v376, 3
    %v382 = vperm.slane %v376, 4
    %v383 = vperm.slane %v376, 5
    %v384 = vperm.slane %v376, 6
    %392 = vmatpush.msra.mxu0 %v369
    %393 = vmatpush.msra.mxu0 %v362
    %394 = vmatpush.msra.mxu0 %v355
    %395 = vmatpush.msra.mxu0 %v348
    %396 = vmatpush.msra.mxu0 %v341
    %397 = vmatpush.msra.mxu0 %v334
    %398 = vmatpush.msra.mxu0 %v327
    %399 = vmatpush.msra.mxu0 %v320
    %400 = vmatpush.msra.mxu0 %v313
    %401 = vmatpush.msra.mxu0 %v306
    %402 = vmatpush.msra.mxu0 %v299
    %403 = vmatpush.msra.mxu0 %v292
    %404 = vmatpush.msra.mxu0 %v285
    %405 = vmatpush.msra.mxu0 %v278
    %406 = vmatpush.msra.mxu0 %v271
    %407 = vmatpush.msra.mxu0 %v264
    %408 = vmatmul.f32.gmra.mxu0 %v256
    %v409 = vpop.f32.mrf.mxu0
    %v410 = vadd.f32 %v378, %v409
    %411 = vmatmul.f32.gmra.mxu0 %v257
    %v412 = vpop.f32.mrf.mxu0
    %v413 = vadd.f32 %v378, %v412
    %414 = vmatmul.f32.gmra.mxu0 %v258
    %v415 = vpop.f32.mrf.mxu0
    %v416 = vadd.f32 %v378, %v415
    %417 = vmatmul.f32.gmra.mxu0 %v259
    %v418 = vpop.f32.mrf.mxu0
    %v419 = vadd.f32 %v378, %v418
    %420 = vmatmul.f32.gmra.mxu0 %v260
    %v421 = vpop.f32.mrf.mxu0
    %v422 = vadd.f32 %v378, %v421
    %423 = vmatmul.f32.gmra.mxu0 %v261
    %v424 = vpop.f32.mrf.mxu0
    %v425 = vadd.f32 %v378, %v424
    %426 = vmatmul.f32.gmra.mxu0 %v262
    %v427 = vpop.f32.mrf.mxu0
    %v428 = vadd.f32 %v378, %v427
    %429 = vmatmul.f32.gmra.mxu0 %v263
    %v430 = vpop.f32.mrf.mxu0
    %v431 = vadd.f32 %v378, %v430
    %432 = vdwg.mxu0
    %433 = vmatpush.msra.mxu0 %v370
    %434 = vmatpush.msra.mxu0 %v363
    %435 = vmatpush.msra.mxu0 %v356
    %436 = vmatpush.msra.mxu0 %v349
    %437 = vmatpush.msra.mxu0 %v342
    %438 = vmatpush.msra.mxu0 %v335
    %439 = vmatpush.msra.mxu0 %v328
    %440 = vmatpush.msra.mxu0 %v321
    %441 = vmatpush.msra.mxu0 %v314
    %442 = vmatpush.msra.mxu0 %v307
    %443 = vmatpush.msra.mxu0 %v300
    %444 = vmatpush.msra.mxu0 %v293
    %445 = vmatpush.msra.mxu0 %v286
    %446 = vmatpush.msra.mxu0 %v279
    %447 = vmatpush.msra.mxu0 %v272
    %448 = vmatpush.msra.mxu0 %v265
    %449 = vmatmul.f32.gmra.mxu0 %v256
    %v450 = vpop.f32.mrf.mxu0
    %v451 = vadd.f32 %v379, %v450
    %452 = vmatmul.f32.gmra.mxu0 %v257
    %v453 = vpop.f32.mrf.mxu0
    %v454 = vadd.f32 %v379, %v453
    %455 = vmatmul.f32.gmra.mxu0 %v258
    %v456 = vpop.f32.mrf.mxu0
    %v457 = vadd.f32 %v379, %v456
    %458 = vmatmul.f32.gmra.mxu0 %v259
    %v459 = vpop.f32.mrf.mxu0
    %v460 = vadd.f32 %v379, %v459
    %461 = vmatmul.f32.gmra.mxu0 %v260
    %v462 = vpop.f32.mrf.mxu0
    %v463 = vadd.f32 %v379, %v462
    %464 = vmatmul.f32.gmra.mxu0 %v261
    %v465 = vpop.f32.mrf.mxu0
    %v466 = vadd.f32 %v379, %v465
    %467 = vmatmul.f32.gmra.mxu0 %v262
    %v468 = vpop.f32.mrf.mxu0
    %v469 = vadd.f32 %v379, %v468
    %470 = vmatmul.f32.gmra.mxu0 %v263
    %v471 = vpop.f32.mrf.mxu0
    %v472 = vadd.f32 %v379, %v471
    %473 = vdwg.mxu0
    %474 = vmatpush.msra.mxu0 %v371
    %475 = vmatpush.msra.mxu0 %v364
    %476 = vmatpush.msra.mxu0 %v357
    %477 = vmatpush.msra.mxu0 %v350
    %478 = vmatpush.msra.mxu0 %v343
    %479 = vmatpush.msra.mxu0 %v336
    %480 = vmatpush.msra.mxu0 %v329
    %481 = vmatpush.msra.mxu0 %v322
    %482 = vmatpush.msra.mxu0 %v315
    %483 = vmatpush.msra.mxu0 %v308
    %484 = vmatpush.msra.mxu0 %v301
    %485 = vmatpush.msra.mxu0 %v294
    %486 = vmatpush.msra.mxu0 %v287
    %487 = vmatpush.msra.mxu0 %v280
    %488 = vmatpush.msra.mxu0 %v273
    %489 = vmatpush.msra.mxu0 %v266
    %490 = vmatmul.f32.gmra.mxu0 %v256
    %v491 = vpop.f32.mrf.mxu0
    %v492 = vadd.f32 %v380, %v491
    %493 = vmatmul.f32.gmra.mxu0 %v257
    %v494 = vpop.f32.mrf.mxu0
    %v495 = vadd.f32 %v380, %v494
    %496 = vmatmul.f32.gmra.mxu0 %v258
    %v497 = vpop.f32.mrf.mxu0
    %v498 = vadd.f32 %v380, %v497
    %499 = vmatmul.f32.gmra.mxu0 %v259
    %v500 = vpop.f32.mrf.mxu0
    %v501 = vadd.f32 %v380, %v500
    %502 = vmatmul.f32.gmra.mxu0 %v260
    %v503 = vpop.f32.mrf.mxu0
    %v504 = vadd.f32 %v380, %v503
    %505 = vmatmul.f32.gmra.mxu0 %v261
    %v506 = vpop.f32.mrf.mxu0
    %v507 = vadd.f32 %v380, %v506
    %508 = vmatmul.f32.gmra.mxu0 %v262
    %v509 = vpop.f32.mrf.mxu0
    %v510 = vadd.f32 %v380, %v509
    %511 = vmatmul.f32.gmra.mxu0 %v263
    %v512 = vpop.f32.mrf.mxu0
    %v513 = vadd.f32 %v380, %v512
    %514 = vdwg.mxu0
    %515 = vmatpush.msra.mxu0 %v372
    %516 = vmatpush.msra.mxu0 %v365
    %517 = vmatpush.msra.mxu0 %v358
    %518 = vmatpush.msra.mxu0 %v351
    %519 = vmatpush.msra.mxu0 %v344
    %520 = vmatpush.msra.mxu0 %v337
    %521 = vmatpush.msra.mxu0 %v330
    %522 = vmatpush.msra.mxu0 %v323
    %523 = vmatpush.msra.mxu0 %v316
    %524 = vmatpush.msra.mxu0 %v309
    %525 = vmatpush.msra.mxu0 %v302
    %526 = vmatpush.msra.mxu0 %v295
    %527 = vmatpush.msra.mxu0 %v288
    %528 = vmatpush.msra.mxu0 %v281
    %529 = vmatpush.msra.mxu0 %v274
    %530 = vmatpush.msra.mxu0 %v267
    %531 = vmatmul.f32.gmra.mxu0 %v256
    %v532 = vpop.f32.mrf.mxu0
    %v533 = vadd.f32 %v381, %v532
    %534 = vmatmul.f32.gmra.mxu0 %v257
    %v535 = vpop.f32.mrf.mxu0
    %v536 = vadd.f32 %v381, %v535
    %537 = vmatmul.f32.gmra.mxu0 %v258
    %v538 = vpop.f32.mrf.mxu0
    %v539 = vadd.f32 %v381, %v538
    %540 = vmatmul.f32.gmra.mxu0 %v259
    %v541 = vpop.f32.mrf.mxu0
    %v542 = vadd.f32 %v381, %v541
    %543 = vmatmul.f32.gmra.mxu0 %v260
    %v544 = vpop.f32.mrf.mxu0
    %v545 = vadd.f32 %v381, %v544
    %546 = vmatmul.f32.gmra.mxu0 %v261
    %v547 = vpop.f32.mrf.mxu0
    %v548 = vadd.f32 %v381, %v547
    %549 = vmatmul.f32.gmra.mxu0 %v262
    %v550 = vpop.f32.mrf.mxu0
    %v551 = vadd.f32 %v381, %v550
    %552 = vmatmul.f32.gmra.mxu0 %v263
    %v553 = vpop.f32.mrf.mxu0
    %v554 = vadd.f32 %v381, %v553
    %555 = vdwg.mxu0
    %556 = vmatpush.msra.mxu0 %v373
    %557 = vmatpush.msra.mxu0 %v366
    %558 = vmatpush.msra.mxu0 %v359
    %559 = vmatpush.msra.mxu0 %v352
    %560 = vmatpush.msra.mxu0 %v345
    %561 = vmatpush.msra.mxu0 %v338
    %562 = vmatpush.msra.mxu0 %v331
    %563 = vmatpush.msra.mxu0 %v324
    %564 = vmatpush.msra.mxu0 %v317
    %565 = vmatpush.msra.mxu0 %v310
    %566 = vmatpush.msra.mxu0 %v303
    %567 = vmatpush.msra.mxu0 %v296
    %568 = vmatpush.msra.mxu0 %v289
    %569 = vmatpush.msra.mxu0 %v282
    %570 = vmatpush.msra.mxu0 %v275
    %571 = vmatpush.msra.mxu0 %v268
    %572 = vmatmul.f32.gmra.mxu0 %v256
    %v573 = vpop.f32.mrf.mxu0
    %v574 = vadd.f32 %v382, %v573
    %575 = vmatmul.f32.gmra.mxu0 %v257
    %v576 = vpop.f32.mrf.mxu0
    %v577 = vadd.f32 %v382, %v576
    %578 = vmatmul.f32.gmra.mxu0 %v258
    %v579 = vpop.f32.mrf.mxu0
    %v580 = vadd.f32 %v382, %v579
    %581 = vmatmul.f32.gmra.mxu0 %v259
    %v582 = vpop.f32.mrf.mxu0
    %v583 = vadd.f32 %v382, %v582
    %584 = vmatmul.f32.gmra.mxu0 %v260
    %v585 = vpop.f32.mrf.mxu0
    %v586 = vadd.f32 %v382, %v585
    %587 = vmatmul.f32.gmra.mxu0 %v261
    %v588 = vpop.f32.mrf.mxu0
    %v589 = vadd.f32 %v382, %v588
    %590 = vmatmul.f32.gmra.mxu0 %v262
    %v591 = vpop.f32.mrf.mxu0
    %v592 = vadd.f32 %v382, %v591
    %593 = vmatmul.f32.gmra.mxu0 %v263
    %v594 = vpop.f32.mrf.mxu0
    %v595 = vadd.f32 %v382, %v594
    %596 = vdwg.mxu0
    %597 = vmatpush.msra.mxu0 %v374
    %598 = vmatpush.msra.mxu0 %v367
    %599 = vmatpush.msra.mxu0 %v360
    %600 = vmatpush.msra.mxu0 %v353
    %601 = vmatpush.msra.mxu0 %v346
    %602 = vmatpush.msra.mxu0 %v339
    %603 = vmatpush.msra.mxu0 %v332
    %604 = vmatpush.msra.mxu0 %v325
    %605 = vmatpush.msra.mxu0 %v318
    %606 = vmatpush.msra.mxu0 %v311
    %607 = vmatpush.msra.mxu0 %v304
    %608 = vmatpush.msra.mxu0 %v297
    %609 = vmatpush.msra.mxu0 %v290
    %610 = vmatpush.msra.mxu0 %v283
    %611 = vmatpush.msra.mxu0 %v276
    %612 = vmatpush.msra.mxu0 %v269
    %613 = vmatmul.f32.gmra.mxu0 %v256
    %v614 = vpop.f32.mrf.mxu0
    %v615 = vadd.f32 %v383, %v614
    %616 = vmatmul.f32.gmra.mxu0 %v257
    %v617 = vpop.f32.mrf.mxu0
    %v618 = vadd.f32 %v383, %v617
    %619 = vmatmul.f32.gmra.mxu0 %v258
    %v620 = vpop.f32.mrf.mxu0
    %v621 = vadd.f32 %v383, %v620
    %622 = vmatmul.f32.gmra.mxu0 %v259
    %v623 = vpop.f32.mrf.mxu0
    %v624 = vadd.f32 %v383, %v623
    %625 = vmatmul.f32.gmra.mxu0 %v260
    %v626 = vpop.f32.mrf.mxu0
    %v627 = vadd.f32 %v383, %v626
    %628 = vmatmul.f32.gmra.mxu0 %v261
    %v629 = vpop.f32.mrf.mxu0
    %v630 = vadd.f32 %v383, %v629
    %631 = vmatmul.f32.gmra.mxu0 %v262
    %v632 = vpop.f32.mrf.mxu0
    %v633 = vadd.f32 %v383, %v632
    %634 = vmatmul.f32.gmra.mxu0 %v263
    %v635 = vpop.f32.mrf.mxu0
    %v636 = vadd.f32 %v383, %v635
    %637 = vdwg.mxu0
    %638 = vmatpush.msra.mxu0 %v375
    %639 = vmatpush.msra.mxu0 %v368
    %640 = vmatpush.msra.mxu0 %v361
    %641 = vmatpush.msra.mxu0 %v354
    %642 = vmatpush.msra.mxu0 %v347
    %643 = vmatpush.msra.mxu0 %v340
    %644 = vmatpush.msra.mxu0 %v333
    %645 = vmatpush.msra.mxu0 %v326
    %646 = vmatpush.msra.mxu0 %v319
    %647 = vmatpush.msra.mxu0 %v312
    %648 = vmatpush.msra.mxu0 %v305
    %649 = vmatpush.msra.mxu0 %v298
    %650 = vmatpush.msra.mxu0 %v291
    %651 = vmatpush.msra.mxu0 %v284
    %652 = vmatpush.msra.mxu0 %v277
    %653 = vmatpush.msra.mxu0 %v270
    %654 = vmatmul.f32.gmra.mxu0 %v256
    %v655 = vpop.f32.mrf.mxu0
    %v656 = vadd.f32 %v384, %v655
    %657 = vmatmul.f32.gmra.mxu0 %v257
    %v658 = vpop.f32.mrf.mxu0
    %v659 = vadd.f32 %v384, %v658
    %660 = vmatmul.f32.gmra.mxu0 %v258
    %v661 = vpop.f32.mrf.mxu0
    %v662 = vadd.f32 %v384, %v661
    %663 = vmatmul.f32.gmra.mxu0 %v259
    %v664 = vpop.f32.mrf.mxu0
    %v665 = vadd.f32 %v384, %v664
    %666 = vmatmul.f32.gmra.mxu0 %v260
    %v667 = vpop.f32.mrf.mxu0
    %v668 = vadd.f32 %v384, %v667
    %669 = vmatmul.f32.gmra.mxu0 %v261
    %v670 = vpop.f32.mrf.mxu0
    %v671 = vadd.f32 %v384, %v670
    %672 = vmatmul.f32.gmra.mxu0 %v262
    %v673 = vpop.f32.mrf.mxu0
    %v674 = vadd.f32 %v384, %v673
    %675 = vmatmul.f32.gmra.mxu0 %v263
    %v676 = vpop.f32.mrf.mxu0
    %v677 = vadd.f32 %v384, %v676
    %678 = vdwg.mxu0
    %679 = vst [vmem:[#allocation2] sm:$0xff] %v410
    %680 = vst [vmem:[#allocation2 + $0x8] sm:$0xff] %v451
    %681 = vst [vmem:[#allocation2 + $0x10] sm:$0xff] %v492
    %682 = vst [vmem:[#allocation2 + $0x18] sm:$0xff] %v533
    %683 = vst [vmem:[#allocation2 + $0x20] sm:$0xff] %v574
    %684 = vst [vmem:[#allocation2 + $0x28] sm:$0xff] %v615
    %vm685 = vcmask 130048
    %686 = vst.msk [vmem:[#allocation2 + $0x30] sm:$0xff] %vm685, %v656
    %687 = vst [vmem:[#allocation2 + $0x38] sm:$0xff] %v413
    %688 = vst [vmem:[#allocation2 + $0x40] sm:$0xff] %v454
    %689 = vst [vmem:[#allocation2 + $0x48] sm:$0xff] %v495
    %690 = vst [vmem:[#allocation2 + $0x50] sm:$0xff] %v536
    %691 = vst [vmem:[#allocation2 + $0x58] sm:$0xff] %v577
    %692 = vst [vmem:[#allocation2 + $0x60] sm:$0xff] %v618
    %693 = vst.msk [vmem:[#allocation2 + $0x68] sm:$0xff] %vm685, %v659
    %694 = vst [vmem:[#allocation2 + $0x70] sm:$0xff] %v416
    %695 = vst [vmem:[#allocation2 + $0x78] sm:$0xff] %v457
    %696 = vst [vmem:[#allocation2 + $0x80] sm:$0xff] %v498
    %697 = vst [vmem:[#allocation2 + $0x88] sm:$0xff] %v539
    %698 = vst [vmem:[#allocation2 + $0x90] sm:$0xff] %v580
    %699 = vst [vmem:[#allocation2 + $0x98] sm:$0xff] %v621
    %700 = vst.msk [vmem:[#allocation2 + $0xa0] sm:$0xff] %vm685, %v662
    %701 = vst [vmem:[#allocation2 + $0xa8] sm:$0xff] %v419
    %702 = vst [vmem:[#allocation2 + $0xb0] sm:$0xff] %v460
    %703 = vst [vmem:[#allocation2 + $0xb8] sm:$0xff] %v501
    %704 = vst [vmem:[#allocation2 + $0xc0] sm:$0xff] %v542
    %705 = vst [vmem:[#allocation2 + $0xc8] sm:$0xff] %v583
    %706 = vst [vmem:[#allocation2 + $0xd0] sm:$0xff] %v624
    %707 = vst.msk [vmem:[#allocation2 + $0xd8] sm:$0xff] %vm685, %v665
    %708 = vst [vmem:[#allocation2 + $0xe0] sm:$0xff] %v422
    %709 = vst [vmem:[#allocation2 + $0xe8] sm:$0xff] %v463
    %710 = vst [vmem:[#allocation2 + $0xf0] sm:$0xff] %v504
    %711 = vst [vmem:[#allocation2 + $0xf8] sm:$0xff] %v545
    %712 = vst [vmem:[#allocation2 + $0x100] sm:$0xff] %v586
    %713 = vst [vmem:[#allocation2 + $0x108] sm:$0xff] %v627
    %714 = vst.msk [vmem:[#allocation2 + $0x110] sm:$0xff] %vm685, %v668
    %715 = vst [vmem:[#allocation2 + $0x118] sm:$0xff] %v425
    %716 = vst [vmem:[#allocation2 + $0x120] sm:$0xff] %v466
    %717 = vst [vmem:[#allocation2 + $0x128] sm:$0xff] %v507
    %718 = vst [vmem:[#allocation2 + $0x130] sm:$0xff] %v548
    %719 = vst [vmem:[#allocation2 + $0x138] sm:$0xff] %v589
    %720 = vst [vmem:[#allocation2 + $0x140] sm:$0xff] %v630
    %721 = vst.msk [vmem:[#allocation2 + $0x148] sm:$0xff] %vm685, %v671
    %722 = vst [vmem:[#allocation2 + $0x150] sm:$0xff] %v428
    %723 = vst [vmem:[#allocation2 + $0x158] sm:$0xff] %v469
    %724 = vst [vmem:[#allocation2 + $0x160] sm:$0xff] %v510
    %725 = vst [vmem:[#allocation2 + $0x168] sm:$0xff] %v551
    %726 = vst [vmem:[#allocation2 + $0x170] sm:$0xff] %v592
    %727 = vst [vmem:[#allocation2 + $0x178] sm:$0xff] %v633
    %728 = vst.msk [vmem:[#allocation2 + $0x180] sm:$0xff] %vm685, %v674
    %729 = vst [vmem:[#allocation2 + $0x188] sm:$0xff] %v431
    %730 = vst [vmem:[#allocation2 + $0x190] sm:$0xff] %v472
    %731 = vst [vmem:[#allocation2 + $0x198] sm:$0xff] %v513
    %732 = vst [vmem:[#allocation2 + $0x1a0] sm:$0xff] %v554
    %733 = vst [vmem:[#allocation2 + $0x1a8] sm:$0xff] %v595
    %734 = vst [vmem:[#allocation2 + $0x1b0] sm:$0xff] %v636
    %735 = vst.msk [vmem:[#allocation2 + $0x1b8] sm:$0xff] %vm685, %v677
    // Predicated region
    $region38: #{tpu_custom_call.1} parent=1 // pred_check
      _
    $region39: #{tpu_custom_call.1} parent=1 // pred_check_branch
      %737 = sbr.rel (0) target = $region41
    $region40: #{tpu_custom_call.1} parent=1 // pred_region
      %739 = vsyncadd [#allocation3], 0
      %s740 = sshll.u32 [#allocation2], 4
      %s741 = int_to_ptr.vmem [resolvable:$true] %s740
      %s742 = sshll.u32 %s9, 4
      %s743 = int_to_ptr.hbm [resolvable:$true] %s742
      %748 = dma.vmem_to_hbm [thread:$0]  %s741, 7168, %s743, [#allocation3], 896, 896, 56
    $region41: #{tpu_custom_call.1} parent=1 // pred_fallthru
      _
    // Predicated region
    $region42: #{tpu_custom_call.1} parent=1 // pred_check
      _
    $region43: #{tpu_custom_call.1} parent=1 // pred_check_branch
      %750 = sbr.rel (0) target = $region45
    $region44: #{tpu_custom_call.1} parent=1 // pred_region
      %752 = dma.done [#allocation3], 7168
    $region45: #{tpu_custom_call.1} parent=1 // pred_fallthru
      _
    %753 = vsyncpa [#allocation3], 1

</llo_original>
